<compile_context>
chip_gen: v7x
topology: tpu7x:2x2x1
jax: 0.10.0
libtpu: 0.0.40
codegen_flags: <defaults>
</compile_context>

<pallas_src>
import jax
import jax.numpy as jnp
from jax.experimental import pallas as pl
from jax.experimental.pallas import tpu as pltpu

LANE = 128      # fast (lane) axis width of a vreg
SUBLANE = 8     # slow (sublane) axis width of a vreg


def _round_up(n: int, m: int) -> int:
    return ((n + m - 1) // m) * m


def _cdiv(a: int, b: int) -> int:
    return -(-a // b)


# ----------------------------- Pallas kernel ------------------------------- #
def _enn_kernel(x_ref, z_ref, w1_ref, b1_ref, w2_ref, b2_ref, w3_ref, b3_ref,
                o_ref):
    """Fused MLP([x; z]) over one (tb rows, one epistemic index) tile.

    x_ref: (tb, XZP)     x in columns [0, d_in), zeros elsewhere   (compute dtype)
    z_ref: (1, tb, XZP)  z in columns [d_in, d_in+d_z), zeros else (compute dtype)
    The layer-1 "concat" is one VPU add of the disjoint-column slabs followed by
    a single lane-dense MXU matmul against the stacked [w1x; w1z].  All matmuls
    accumulate in f32; bias + ReLU epilogues are f32.  (Matmuls run on the MXU
    on every TPU generation; use bf16 operands on v5e to avoid f32 emulation.)
    """
    xz = x_ref[...] + z_ref[0]                                   # fused concat
    h = jnp.dot(xz, w1_ref[...], preferred_element_type=jnp.float32)
    h = jnp.maximum(h + b1_ref[...], 0.0)
    h = jnp.dot(h.astype(w2_ref.dtype), w2_ref[...],
                preferred_element_type=jnp.float32)
    h = jnp.maximum(h + b2_ref[...], 0.0)
    o = jnp.dot(h.astype(w3_ref.dtype), w3_ref[...],
                preferred_element_type=jnp.float32)
    o_ref[0] = (o + b3_ref[...]).astype(o_ref.dtype)             # only out_dim lanes


# --------------------------- tile-size selection ---------------------------- #
def _choose_row_tile(b: int, k: int, block_rows: int):
    """Row tile (multiple of 8); split the row axis if there would otherwise be
    a single grid step, so v7x megacore can shard across its two TensorCores."""
    b8 = _round_up(max(b, 1), SUBLANE)
    tb = min(_round_up(max(block_rows, 1), SUBLANE), b8)
    if k * _cdiv(b8, tb) < 2 and b8 >= 2 * SUBLANE:
        tb = _round_up(_cdiv(b8, 2), SUBLANE)
    b_pad = _round_up(b, tb)
    return tb, b_pad


# ------------------------------- public API --------------------------------- #
def enn_forward(x, z, prepared, *, block_rows=1024):
    """Epistemic Neural Network forward: posterior samples for indices z.

    x: (B, input_dim) float32
    z: (B, index_dim) or (B, K, index_dim) float32 epistemic indices
    returns: (B, output_dim) or (B, K, output_dim) float32
    """
    d_in = prepared["input_dim"]
    d_z = prepared["index_dim"]
    out_dim = prepared["output_dim"]
    xzp = prepared["xz_pad"]
    cd = prepared["compute_dtype"]
    w1, b1 = prepared["w1"], prepared["b1"]
    w2, b2 = prepared["w2"], prepared["b2"]
    w3, b3 = prepared["w3"], prepared["b3"]
    h1p, h2p = w1.shape[1], w2.shape[1]

    single_index = (z.ndim == 2)
    z3 = z[:, None, :] if single_index else z
    b, num_k, _ = z3.shape

    tb, b_pad = _choose_row_tile(b, num_k, block_rows)
    nb = b_pad // tb

    # Lane-dense input slabs (operand casts hoisted out of the kernel).
    # x is packed once per batch row -- NOT duplicated K times -- and re-used
    # across the K grid axis because its index_map ignores k.
    xp = jnp.pad(x.astype(cd), ((0, b_pad - b), (0, xzp - d_in)))
    zt = jnp.transpose(z3, (1, 0, 2)).astype(cd)                 # (K, B, d_z)
    zp = jnp.pad(zt, ((0, 0), (0, b_pad - b), (d_in, xzp - d_in - d_z)))

    in_item = jnp.dtype(cd).itemsize
    flops = 2 * num_k * b_pad * (xzp * h1p + h1p * h2p + h2p * out_dim)
    bytes_accessed = (b_pad * xzp * in_item                       # x slab (reused over K)
                      + num_k * b_pad * xzp * in_item             # z slab
                      + (xzp * h1p + h1p * h2p + h2p * out_dim) * in_item  # weights
                      + (h1p + h2p + out_dim) * 4                 # f32 biases
                      + num_k * b_pad * out_dim * 4)              # un-padded f32 output

    wconst = lambda a: pl.BlockSpec(a.shape, lambda i, j: (0, 0))  # VMEM-resident

    out = pl.pallas_call(
        _enn_kernel,
        out_shape=jax.ShapeDtypeStruct((num_k, b_pad, out_dim), jnp.float32),
        grid=(nb, num_k),
        in_specs=[
            pl.BlockSpec((tb, xzp), lambda i, j: (i, 0)),         # x slab: ignores K axis
            pl.BlockSpec((1, tb, xzp), lambda i, j: (j, i, 0)),   # z slab
            wconst(w1), wconst(b1), wconst(w2), wconst(b2), wconst(w3), wconst(b3),
        ],
        out_specs=pl.BlockSpec((1, tb, out_dim), lambda i, j: (j, i, 0)),
        compiler_params=pltpu.CompilerParams(
            dimension_semantics=("parallel", "parallel")),
        cost_estimate=pl.CostEstimate(flops=int(flops), transcendentals=0,
                                      bytes_accessed=int(bytes_accessed)),
    )(xp, zp, w1, b1, w2, b2, w3, b3)

    out = out[:, :b, :]                          # (K, B, out_dim); nothing padded to slice
    if single_index:
        return out[0]
    return jnp.transpose(out, (1, 0, 2))


# --------------------------- parameter handling ----------------------------- #
def init_params(key, input_dim, index_dim, hidden_dims, output_dim):
    """Logical (unpadded) MLP([x; z]) parameters, as the PyTorch module holds."""
    dims = [input_dim + index_dim] + list(hidden_dims) + [output_dim]
    params = []
    for i in range(len(dims) - 1):
        key, kw = jax.random.split(key)
        w = jax.random.normal(kw, (dims[i], dims[i + 1]), jnp.float32) / jnp.sqrt(dims[i])
        b = jnp.zeros((1, dims[i + 1]), jnp.float32)
        params += [w, b]
    return tuple(params)


def recommended_compute_dtype():
    """bf16 matmul operands on v5e (its MXU is bf16-native; f32 dots lower to
    multi-pass emulation); f32 elsewhere for exactness.  f32 accumulation either way."""
    try:
        kind = jax.devices()[0].device_kind.lower()
    except Exception:
        return jnp.float32
    return jnp.bfloat16 if ("v5 lite" in kind or "v5e" in kind) else jnp.float32


def prepare_params(params, input_dim, index_dim, compute_dtype=jnp.float32):
    """One-time TPU prep:
      * pad w1's contraction (row) dim to XZ_PAD = round_up(d_in+d_z, 128) so
        layer 1 is a single lane-dense MXU matmul (stacked [w1x; w1z]),
      * pad hidden feature dims to multiples of 128 (lane-dense matmuls),
      * leave the OUTPUT feature dim un-padded (no 128x write amplification),
      * pre-cast matmul operands to compute_dtype (hoists per-step casts out of
        the kernel; halves weight/input DMA bytes on the bf16 path); biases
        stay f32 for the f32 bias+ReLU epilogue.
    # TODO(synk): generation-aware 256-wide padding for v6e/v7x once layer
    # sizes are large enough for this kernel to become MXU-bound.
    """
    w1, b1, w2, b2, w3, b3 = params
    h1, h2, out_dim = w1.shape[1], w2.shape[1], w3.shape[1]
    xzp = _round_up(input_dim + index_dim, LANE)
    h1p, h2p = _round_up(h1, LANE), _round_up(h2, LANE)

    def pad2(a, rows, cols):
        return jnp.pad(a, ((0, rows - a.shape[0]), (0, cols - a.shape[1])))

    return dict(
        w1=pad2(w1, xzp, h1p).astype(compute_dtype),
        b1=pad2(b1, 1, h1p).astype(jnp.float32),
        w2=pad2(w2, h1p, h2p).astype(compute_dtype),
        b2=pad2(b2, 1, h2p).astype(jnp.float32),
        w3=pad2(w3, h2p, out_dim).astype(compute_dtype),
        b3=b3.astype(jnp.float32),
        input_dim=input_dim, index_dim=index_dim, output_dim=out_dim,
        xz_pad=xzp, compute_dtype=compute_dtype,
    )


def enn_forward_ref(x, z, params):
    w1, b1, w2, b2, w3, b3 = params
    h = jnp.concatenate([x, z], axis=-1)
    h = jnp.maximum(h @ w1 + b1, 0.0)
    h = jnp.maximum(h @ w2 + b2, 0.0)
    return h @ w3 + b3


# ---------------------------------- main ------------------------------------ #
if __name__ == "__main__":
    key = jax.random.PRNGKey(0)
    batch, input_dim, index_dim = 8, 16, 8
    hidden_dims, output_dim = [32, 32], 1

    k1, k2, k3, k4 = jax.random.split(key, 4)
    x = jax.random.normal(k1, (batch, input_dim), jnp.float32)
    z = jax.random.normal(k2, (batch, index_dim), jnp.float32)
    params = init_params(k4, input_dim, index_dim, hidden_dims, output_dim)

    prepared_f32 = prepare_params(params, input_dim, index_dim, jnp.float32)

    # --- single epistemic index per example (classic forward(x, z)) ---------
    out = enn_forward(x, z, prepared_f32)
    jax.block_until_ready(out)
    ref = enn_forward_ref(x, z, params)
    assert out.shape == (batch, output_dim)
    assert jnp.allclose(out, ref, atol=1e-4, rtol=1e-4), "mismatch vs reference (K=1)"

    # --- K epistemic indices per example, one kernel launch -----------------
    K = 4
    zK = jax.random.normal(k3, (batch, K, index_dim), jnp.float32)
    outK = enn_forward(x, zK, prepared_f32)
    jax.block_until_ready(outK)
    refK = jnp.stack([enn_forward_ref(x, zK[:, kk], params) for kk in range(K)], axis=1)
    assert outK.shape == (batch, K, output_dim)
    assert jnp.allclose(outK, refK, atol=1e-4, rtol=1e-4), "mismatch vs reference (K=4)"

    # --- bf16 MXU-operand fast path (recommended default on v5e) ------------
    prepared_bf16 = prepare_params(params, input_dim, index_dim, jnp.bfloat16)
    out_bf16 = enn_forward(x, zK, prepared_bf16)
    jax.block_until_ready(out_bf16)
    assert out_bf16.shape == (batch, K, output_dim)
    assert jnp.allclose(out_bf16, refK, atol=1e-1, rtol=1e-1), "bf16 path diverged"

    # TODO(synk): base class is abstract; this implements the canonical
    # MLP([x; z]) ENN posterior sampler used by Pearl's concrete subclasses.
    print("KERNEL_OK")
</pallas_src>

<mosaic_0001>
module attributes {stable_mosaic.version = 11 : i64} {
  func.func @_enn_kernel(%arg0: i32, %arg1: i32, %arg2: memref<8x128xf32, #tpu.memory_space<vmem>>, %arg3: memref<1x8x128xf32, #tpu.memory_space<vmem>>, %arg4: memref<128x128xf32, #tpu.memory_space<vmem>>, %arg5: memref<1x128xf32, #tpu.memory_space<vmem>>, %arg6: memref<128x128xf32, #tpu.memory_space<vmem>>, %arg7: memref<1x128xf32, #tpu.memory_space<vmem>>, %arg8: memref<128x1xf32, #tpu.memory_space<vmem>>, %arg9: memref<1x1xf32, #tpu.memory_space<vmem>>, %arg10: memref<1x8x1xf32, #tpu.memory_space<vmem>>) attributes {dimension_semantics = [#tpu.dimension_semantics<parallel>, #tpu.dimension_semantics<parallel>], iteration_bounds = array<i64: 1, 1>, scalar_prefetch = 0 : i64, scratch_operands = 0 : i64, tpu.core_type = #tpu.core_type<tc>, window_params = [{transform_indices = @transform_0, window_bounds = array<i64: 8, 128>}, {transform_indices = @transform_1, window_bounds = array<i64: 1, 8, 128>}, {pipeline_mode = #tpu.pipeline_mode<synchronous>, transform_indices = @transform_2, window_bounds = array<i64: 128, 128>}, {pipeline_mode = #tpu.pipeline_mode<synchronous>, transform_indices = @transform_3, window_bounds = array<i64: 1, 128>}, {pipeline_mode = #tpu.pipeline_mode<synchronous>, transform_indices = @transform_4, window_bounds = array<i64: 128, 128>}, {pipeline_mode = #tpu.pipeline_mode<synchronous>, transform_indices = @transform_5, window_bounds = array<i64: 1, 128>}, {pipeline_mode = #tpu.pipeline_mode<synchronous>, transform_indices = @transform_6, window_bounds = array<i64: 128, 1>}, {pipeline_mode = #tpu.pipeline_mode<synchronous>, transform_indices = @transform_7, window_bounds = array<i64: 1, 1>}, {transform_indices = @transform_8, window_bounds = array<i64: 1, 8, 1>}]} {
    %c0 = arith.constant 0 : index
    %c0_0 = arith.constant 0 : index
    %0 = vector.load %arg2[%c0, %c0_0] : memref<8x128xf32, #tpu.memory_space<vmem>>, vector<8x128xf32>
    %c0_1 = arith.constant 0 : index
    %c0_2 = arith.constant 0 : index
    %c0_3 = arith.constant 0 : index
    %1 = vector.load %arg3[%c0_1, %c0_2, %c0_3] : memref<1x8x128xf32, #tpu.memory_space<vmem>>, vector<1x8x128xf32>
    %2 = vector.shape_cast %1 : vector<1x8x128xf32> to vector<8x128xf32>
    %3 = arith.addf %0, %2 : vector<8x128xf32>
    %c0_4 = arith.constant 0 : index
    %c0_5 = arith.constant 0 : index
    %4 = vector.load %arg4[%c0_4, %c0_5] : memref<128x128xf32, #tpu.memory_space<vmem>>, vector<128x128xf32>
    %cst = arith.constant dense<0.000000e+00> : vector<8x128xf32>
    %5 = tpu.matmul %3, %4, %cst {dimension_numbers = #tpu.dot_dimension_numbers<[1], [0], [0], [1], [0, 0, 1, 1], [], []>} : vector<8x128xf32>, vector<128x128xf32>, vector<8x128xf32> -> vector<8x128xf32>
    %c0_6 = arith.constant 0 : index
    %c0_7 = arith.constant 0 : index
    %6 = vector.load %arg5[%c0_6, %c0_7] : memref<1x128xf32, #tpu.memory_space<vmem>>, vector<1x128xf32>
    %7 = vector.broadcast %6 : vector<1x128xf32> to vector<8x128xf32>
    %8 = arith.addf %5, %7 : vector<8x128xf32>
    %cst_8 = arith.constant 0.000000e+00 : f32
    %9 = vector.broadcast %cst_8 : f32 to vector<8x128xf32>
    %10 = arith.maximumf %8, %9 : vector<8x128xf32>
    %c0_9 = arith.constant 0 : index
    %c0_10 = arith.constant 0 : index
    %11 = vector.load %arg6[%c0_9, %c0_10] : memref<128x128xf32, #tpu.memory_space<vmem>>, vector<128x128xf32>
    %cst_11 = arith.constant dense<0.000000e+00> : vector<8x128xf32>
    %12 = tpu.matmul %10, %11, %cst_11 {dimension_numbers = #tpu.dot_dimension_numbers<[1], [0], [0], [1], [0, 0, 1, 1], [], []>} : vector<8x128xf32>, vector<128x128xf32>, vector<8x128xf32> -> vector<8x128xf32>
    %c0_12 = arith.constant 0 : index
    %c0_13 = arith.constant 0 : index
    %13 = vector.load %arg7[%c0_12, %c0_13] : memref<1x128xf32, #tpu.memory_space<vmem>>, vector<1x128xf32>
    %14 = vector.broadcast %13 : vector<1x128xf32> to vector<8x128xf32>
    %15 = arith.addf %12, %14 : vector<8x128xf32>
    %cst_14 = arith.constant 0.000000e+00 : f32
    %16 = vector.broadcast %cst_14 : f32 to vector<8x128xf32>
    %17 = arith.maximumf %15, %16 : vector<8x128xf32>
    %c0_15 = arith.constant 0 : index
    %c0_16 = arith.constant 0 : index
    %18 = vector.load %arg8[%c0_15, %c0_16] : memref<128x1xf32, #tpu.memory_space<vmem>>, vector<128x1xf32>
    %cst_17 = arith.constant dense<0.000000e+00> : vector<8x1xf32>
    %19 = tpu.matmul %17, %18, %cst_17 {dimension_numbers = #tpu.dot_dimension_numbers<[1], [0], [0], [1], [0, 0, 1, 1], [], []>} : vector<8x128xf32>, vector<128x1xf32>, vector<8x1xf32> -> vector<8x1xf32>
    %c0_18 = arith.constant 0 : index
    %c0_19 = arith.constant 0 : index
    %20 = vector.load %arg9[%c0_18, %c0_19] : memref<1x1xf32, #tpu.memory_space<vmem>>, vector<1x1xf32>
    %21 = vector.broadcast %20 : vector<1x1xf32> to vector<8x1xf32>
    %22 = arith.addf %19, %21 : vector<8x1xf32>
    %c0_20 = arith.constant 0 : index
    %c0_21 = arith.constant 0 : index
    %c0_22 = arith.constant 0 : index
    %23 = vector.load %arg10[%c0_20, %c0_21, %c0_22] : memref<1x8x1xf32, #tpu.memory_space<vmem>>, vector<1x8x1xf32>
    %24 = vector.shape_cast %23 : vector<1x8x1xf32> to vector<8x1xf32>
    %25 = vector.shape_cast %22 : vector<8x1xf32> to vector<1x8x1xf32>
    tpu.vector_store %arg10[%c0_20, %c0_21, %c0_22], %25 {strides = array<i32>} : memref<1x8x1xf32, #tpu.memory_space<vmem>>, vector<1x8x1xf32>,
    return
  }
  func.func @transform_0(%arg0: i32, %arg1: i32) -> (i32, i32) {
    %c0_i32 = arith.constant 0 : i32
    %c0_i32_0 = arith.constant 0 : i32
    return %arg0, %c0_i32 : i32, i32
  }
  func.func @transform_1(%arg0: i32, %arg1: i32) -> (i32, i32, i32) {
    %c0_i32 = arith.constant 0 : i32
    %c0_i32_0 = arith.constant 0 : i32
    return %arg1, %arg0, %c0_i32 : i32, i32, i32
  }
  func.func @transform_2(%arg0: i32, %arg1: i32) -> (i32, i32) {
    %c0_i32 = arith.constant 0 : i32
    %c0_i32_0 = arith.constant 0 : i32
    %c0_i32_1 = arith.constant 0 : i32
    return %c0_i32, %c0_i32_0 : i32, i32
  }
  func.func @transform_3(%arg0: i32, %arg1: i32) -> (i32, i32) {
    %c0_i32 = arith.constant 0 : i32
    %c0_i32_0 = arith.constant 0 : i32
    %c0_i32_1 = arith.constant 0 : i32
    return %c0_i32, %c0_i32_0 : i32, i32
  }
  func.func @transform_4(%arg0: i32, %arg1: i32) -> (i32, i32) {
    %c0_i32 = arith.constant 0 : i32
    %c0_i32_0 = arith.constant 0 : i32
    %c0_i32_1 = arith.constant 0 : i32
    return %c0_i32, %c0_i32_0 : i32, i32
  }
  func.func @transform_5(%arg0: i32, %arg1: i32) -> (i32, i32) {
    %c0_i32 = arith.constant 0 : i32
    %c0_i32_0 = arith.constant 0 : i32
    %c0_i32_1 = arith.constant 0 : i32
    return %c0_i32, %c0_i32_0 : i32, i32
  }
  func.func @transform_6(%arg0: i32, %arg1: i32) -> (i32, i32) {
    %c0_i32 = arith.constant 0 : i32
    %c0_i32_0 = arith.constant 0 : i32
    %c0_i32_1 = arith.constant 0 : i32
    return %c0_i32, %c0_i32_0 : i32, i32
  }
  func.func @transform_7(%arg0: i32, %arg1: i32) -> (i32, i32) {
    %c0_i32 = arith.constant 0 : i32
    %c0_i32_0 = arith.constant 0 : i32
    %c0_i32_1 = arith.constant 0 : i32
    return %c0_i32, %c0_i32_0 : i32, i32
  }
  func.func @transform_8(%arg0: i32, %arg1: i32) -> (i32, i32, i32) {
    %c0_i32 = arith.constant 0 : i32
    %c0_i32_0 = arith.constant 0 : i32
    return %arg1, %arg0, %c0_i32 : i32, i32, i32
  }
}

</mosaic_0001>

<llo_original>
// kernel: tpu_custom_call.1
$region0: #{tpu_custom_call.1}
  #allocation0 [shape = 'u32[]', space=smem, size = 0x4, offset = 0x4, fixed_abs, tag = 'smem constant byte address 0x4 - core index']
  #allocation1 [shape = 'u32[144,128]{1,0:T(1,128)}', space=vmem, size = 0x12000, scoped, tag = 'internal scratch']
  #allocation2 [shape = 'f32[1,1]{1,0:T(1,128)S(1)}', space=vmem, size = 0x200, scoped, tag = 'scoped memory for tpu_custom_call.1']
  %s0 = inlined_call_operand.vmem [shape: f32[8,128], index: 0, kind: input, shape index: {}]
  %s1 = inlined_call_operand.hbm [shape: f32[1,8,128], index: 1, kind: input, shape index: {}]
  %s2 = inlined_call_operand.vmem [shape: f32[128,128], index: 2, kind: input, shape index: {}]
  %s3 = inlined_call_operand.vmem [shape: f32[1,128], index: 3, kind: input, shape index: {}]
  %s4 = inlined_call_operand.hbm [shape: f32[128,128], index: 4, kind: input, shape index: {}]
  %s5 = inlined_call_operand.vmem [shape: f32[1,128], index: 5, kind: input, shape index: {}]
  %s6 = inlined_call_operand.vmem [shape: f32[128,1], index: 6, kind: input, shape index: {}]
  %s7 = inlined_call_operand.<no memory space> [shape: f32[1,1], index: 7, kind: input, shape index: {}]
  %s8 = inlined_call_operand.vmem [shape: f32[1,8,1], index: 8, kind: output, shape index: {}]
  %s9 = sld [smem:[#allocation0]]
  $region50: #{tpu_custom_call.1} parent=0
    _
  %s11 = ssub.s32 1, %s9
  %s12 = scalar_select 0, %s11, %s9
  %v13 = vstv %s7
  %14 = vst [vmem:[#allocation2] sm:$0x1] %v13
  $region1: #{tpu_custom_call.1} parent=0
    #allocation3 [shape = 'u8[4096]{0}', space=vmem, size = 0x1000, scoped, tag = 'input window, operand 1, single buffered']
    #allocation4 [shape = 's32[1]{0}', space=sflag, size = 0x4, scoped, tag = 'scoped memory for tpu_custom_call.1']
    #allocation5 [shape = 'u8[65536]{0}', space=vmem, size = 0x10000, scoped, tag = 'input window, operand 4, single buffered']
    #allocation6 [shape = 's32[1]{0}', space=sflag, size = 0x4, scoped, tag = 'scoped memory for tpu_custom_call.1']
    %15 = vsyncpa [#allocation4], 0
    %16 = vsyncpa [#allocation6], 0
    // Predicated region
    $region2: #{tpu_custom_call.1} parent=1 // pred_check
      _
    $region3: #{tpu_custom_call.1} parent=1 // pred_check_branch
      %18 = sbr.rel (0) target = $region5
    $region4: #{tpu_custom_call.1} parent=1 // pred_region
      _
    $region5: #{tpu_custom_call.1} parent=1 // pred_fallthru
      _
    // Predicated region
    $region6: #{tpu_custom_call.1} parent=1 // pred_check
      _
    $region7: #{tpu_custom_call.1} parent=1 // pred_check_branch
      %20 = sbr.rel (0) target = $region9
    $region8: #{tpu_custom_call.1} parent=1 // pred_region
      %s22 = ssub.s32 128, 128
      %23 = vsyncadd [#allocation4], %s22
      %s25 = sshll.u32 [#allocation3], 4
      %s26 = int_to_ptr.vmem [resolvable:$true] %s25
      %28 = dma.hbm_to_vmem [thread:$0]  %s1, 128, %s26, [#allocation4]
    $region9: #{tpu_custom_call.1} parent=1 // pred_fallthru
      _
    // Predicated region
    $region10: #{tpu_custom_call.1} parent=1 // pred_check
      _
    $region11: #{tpu_custom_call.1} parent=1 // pred_check_branch
      %30 = sbr.rel (0) target = $region13
    $region12: #{tpu_custom_call.1} parent=1 // pred_region
      _
    $region13: #{tpu_custom_call.1} parent=1 // pred_fallthru
      _
    // Predicated region
    $region14: #{tpu_custom_call.1} parent=1 // pred_check
      _
    $region15: #{tpu_custom_call.1} parent=1 // pred_check_branch
      %32 = sbr.rel (0) target = $region17
    $region16: #{tpu_custom_call.1} parent=1 // pred_region
      _
    $region17: #{tpu_custom_call.1} parent=1 // pred_fallthru
      _
    // Predicated region
    $region18: #{tpu_custom_call.1} parent=1 // pred_check
      _
    $region19: #{tpu_custom_call.1} parent=1 // pred_check_branch
      %34 = sbr.rel (0) target = $region21
    $region20: #{tpu_custom_call.1} parent=1 // pred_region
      %s36 = ssub.s32 2048, 2048
      %37 = vsyncadd [#allocation6], %s36
      %s38 = sshll.u32 [#allocation5], 4
      %s39 = int_to_ptr.vmem [resolvable:$true] %s38
      %44 = dma.hbm_to_vmem [thread:$0]  %s4, 2048, %s39, [#allocation6], 128, 128, 8
    $region21: #{tpu_custom_call.1} parent=1 // pred_fallthru
      _
    // Predicated region
    $region22: #{tpu_custom_call.1} parent=1 // pred_check
      _
    $region23: #{tpu_custom_call.1} parent=1 // pred_check_branch
      %46 = sbr.rel (0) target = $region25
    $region24: #{tpu_custom_call.1} parent=1 // pred_region
      _
    $region25: #{tpu_custom_call.1} parent=1 // pred_fallthru
      _
    // Predicated region
    $region26: #{tpu_custom_call.1} parent=1 // pred_check
      _
    $region27: #{tpu_custom_call.1} parent=1 // pred_check_branch
      %48 = sbr.rel (0) target = $region29
    $region28: #{tpu_custom_call.1} parent=1 // pred_region
      _
    $region29: #{tpu_custom_call.1} parent=1 // pred_fallthru
      _
    // Predicated region
    $region30: #{tpu_custom_call.1} parent=1 // pred_check
      _
    $region31: #{tpu_custom_call.1} parent=1 // pred_check_branch
      %50 = sbr.rel (0) target = $region33
    $region32: #{tpu_custom_call.1} parent=1 // pred_region
      _
    $region33: #{tpu_custom_call.1} parent=1 // pred_fallthru
      _
    // Predicated region
    $region34: #{tpu_custom_call.1} parent=1 // pred_check
      _
    $region35: #{tpu_custom_call.1} parent=1 // pred_check_branch
      %52 = sbr.rel (0) target = $region37
    $region36: #{tpu_custom_call.1} parent=1 // pred_region
      %53 = dma.done [#allocation4], 128
    $region37: #{tpu_custom_call.1} parent=1 // pred_fallthru
      _
    // Predicated region
    $region38: #{tpu_custom_call.1} parent=1 // pred_check
      _
    $region39: #{tpu_custom_call.1} parent=1 // pred_check_branch
      %55 = sbr.rel (0) target = $region41
    $region40: #{tpu_custom_call.1} parent=1 // pred_region
      %56 = dma.done [#allocation6], 2048
    $region41: #{tpu_custom_call.1} parent=1 // pred_fallthru
      _
    %v57 = vld [vmem:[%s0] sm:$0xff]
    %v58 = vld [vmem:[#allocation3] sm:$0xff]
    %v59 = vadd.f32 %v57, %v58
    %v60 = vld [vmem:[%s2] sm:$0xff]
    %v61 = vld [vmem:[%s2 + $0x8] sm:$0xff]
    %v62 = vld [vmem:[%s2 + $0x10] sm:$0xff]
    %v63 = vld [vmem:[%s2 + $0x18] sm:$0xff]
    %v64 = vld [vmem:[%s2 + $0x20] sm:$0xff]
    %v65 = vld [vmem:[%s2 + $0x28] sm:$0xff]
    %v66 = vld [vmem:[%s2 + $0x30] sm:$0xff]
    %v67 = vld [vmem:[%s2 + $0x38] sm:$0xff]
    %v68 = vld [vmem:[%s2 + $0x40] sm:$0xff]
    %v69 = vld [vmem:[%s2 + $0x48] sm:$0xff]
    %v70 = vld [vmem:[%s2 + $0x50] sm:$0xff]
    %v71 = vld [vmem:[%s2 + $0x58] sm:$0xff]
    %v72 = vld [vmem:[%s2 + $0x60] sm:$0xff]
    %v73 = vld [vmem:[%s2 + $0x68] sm:$0xff]
    %v74 = vld [vmem:[%s2 + $0x70] sm:$0xff]
    %v75 = vld [vmem:[%s2 + $0x78] sm:$0xff]
    %v76 = vld [vmem:[%s3] sm:$0x1]
    %v78 = vlaneseq
    %v79 = vshrl.u32 %v78, 7
    %v80 = vsub.s32 0, %v79
    %v81 = vrot.slane %v76, %v80
    %83 = vmatprep.subr.mxu0 0.0
    %84 = vmatpush1.msra.mxu0 %v60
    %85 = vmatprep.subr.mxu0 0.0
    %86 = vmatpush1.msra.mxu0 %v61
    %87 = vmatprep.subr.mxu0 0.0
    %88 = vmatpush1.msra.mxu0 %v62
    %89 = vmatprep.subr.mxu0 0.0
    %90 = vmatpush1.msra.mxu0 %v63
    %91 = vmatprep.subr.mxu0 0.0
    %92 = vmatpush1.msra.mxu0 %v64
    %93 = vmatprep.subr.mxu0 0.0
    %94 = vmatpush1.msra.mxu0 %v65
    %95 = vmatprep.subr.mxu0 0.0
    %96 = vmatpush1.msra.mxu0 %v66
    %97 = vmatprep.subr.mxu0 0.0
    %98 = vmatpush1.msra.mxu0 %v67
    %99 = vmatprep.subr.mxu0 0.0
    %100 = vmatpush1.msra.mxu0 %v68
    %101 = vmatprep.subr.mxu0 0.0
    %102 = vmatpush1.msra.mxu0 %v69
    %103 = vmatprep.subr.mxu0 0.0
    %104 = vmatpush1.msra.mxu0 %v70
    %105 = vmatprep.subr.mxu0 0.0
    %106 = vmatpush1.msra.mxu0 %v71
    %107 = vmatprep.subr.mxu0 0.0
    %108 = vmatpush1.msra.mxu0 %v72
    %109 = vmatprep.subr.mxu0 0.0
    %110 = vmatpush1.msra.mxu0 %v73
    %111 = vmatprep.subr.mxu0 0.0
    %112 = vmatpush1.msra.mxu0 %v74
    %113 = vmatprep.subr.mxu0 0.0
    %114 = vmatpush1.msra.mxu0 %v75
    %115 = vmatprep.subr.mxu0 0.0
    %116 = vmatpush1.msra.mxu0 0.0
    %117 = vmatprep.subr.mxu0 0.0
    %118 = vmatpush1.msra.mxu0 0.0
    %119 = vmatprep.subr.mxu0 0.0
    %120 = vmatpush1.msra.mxu0 0.0
    %121 = vmatprep.subr.mxu0 0.0
    %122 = vmatpush1.msra.mxu0 0.0
    %123 = vmatprep.subr.mxu0 0.0
    %124 = vmatpush1.msra.mxu0 0.0
    %125 = vmatprep.subr.mxu0 0.0
    %126 = vmatpush1.msra.mxu0 0.0
    %127 = vmatprep.subr.mxu0 0.0
    %128 = vmatpush1.msra.mxu0 0.0
    %129 = vmatprep.subr.mxu0 0.0
    %130 = vmatpush1.msra.mxu0 0.0
    %131 = vmatprep.subr.mxu0 0.0
    %132 = vmatpush1.msra.mxu0 0.0
    %133 = vmatprep.subr.mxu0 0.0
    %134 = vmatpush1.msra.mxu0 0.0
    %135 = vmatprep.subr.mxu0 0.0
    %136 = vmatpush1.msra.mxu0 0.0
    %137 = vmatprep.subr.mxu0 0.0
    %138 = vmatpush1.msra.mxu0 0.0
    %139 = vmatprep.subr.mxu0 0.0
    %140 = vmatpush1.msra.mxu0 0.0
    %141 = vmatprep.subr.mxu0 0.0
    %142 = vmatpush1.msra.mxu0 0.0
    %143 = vmatprep.subr.mxu0 0.0
    %144 = vmatpush1.msra.mxu0 0.0
    %145 = vmatprep.subr.mxu0 0.0
    %146 = vmatpush1.msra.mxu0 0.0
    %147 = vmatprep.mubr.f32.mxu0 0.0
    %148 = vmatmul.mubr.f32.gmra.mrb[0].mxu0 %v59
    %v149 = vpop.f32.mrb[0].mxu0
    %v150 = vadd.f32 %v81, %v149
    %v151 = vpop.f32.mrb[0].mxu0
    %152 = vdwg.mxu0
    %v153 = vmax.f32 %v150, 0.0
    %v154 = vld [vmem:[#allocation5] sm:$0xff]
    %v155 = vld [vmem:[#allocation5 + $0x8] sm:$0xff]
    %v156 = vld [vmem:[#allocation5 + $0x10] sm:$0xff]
    %v157 = vld [vmem:[#allocation5 + $0x18] sm:$0xff]
    %v158 = vld [vmem:[#allocation5 + $0x20] sm:$0xff]
    %v159 = vld [vmem:[#allocation5 + $0x28] sm:$0xff]
    %v160 = vld [vmem:[#allocation5 + $0x30] sm:$0xff]
    %v161 = vld [vmem:[#allocation5 + $0x38] sm:$0xff]
    %v162 = vld [vmem:[#allocation5 + $0x40] sm:$0xff]
    %v163 = vld [vmem:[#allocation5 + $0x48] sm:$0xff]
    %v164 = vld [vmem:[#allocation5 + $0x50] sm:$0xff]
    %v165 = vld [vmem:[#allocation5 + $0x58] sm:$0xff]
    %v166 = vld [vmem:[#allocation5 + $0x60] sm:$0xff]
    %v167 = vld [vmem:[#allocation5 + $0x68] sm:$0xff]
    %v168 = vld [vmem:[#allocation5 + $0x70] sm:$0xff]
    %v169 = vld [vmem:[#allocation5 + $0x78] sm:$0xff]
    %v170 = vld [vmem:[%s5] sm:$0x1]
    %v172 = vlaneseq
    %v173 = vshrl.u32 %v172, 7
    %v174 = vsub.s32 0, %v173
    %v175 = vrot.slane %v170, %v174
    %177 = vmatprep.subr.mxu0 0.0
    %178 = vmatpush1.msra.mxu0 %v154
    %179 = vmatprep.subr.mxu0 0.0
    %180 = vmatpush1.msra.mxu0 %v155
    %181 = vmatprep.subr.mxu0 0.0
    %182 = vmatpush1.msra.mxu0 %v156
    %183 = vmatprep.subr.mxu0 0.0
    %184 = vmatpush1.msra.mxu0 %v157
    %185 = vmatprep.subr.mxu0 0.0
    %186 = vmatpush1.msra.mxu0 %v158
    %187 = vmatprep.subr.mxu0 0.0
    %188 = vmatpush1.msra.mxu0 %v159
    %189 = vmatprep.subr.mxu0 0.0
    %190 = vmatpush1.msra.mxu0 %v160
    %191 = vmatprep.subr.mxu0 0.0
    %192 = vmatpush1.msra.mxu0 %v161
    %193 = vmatprep.subr.mxu0 0.0
    %194 = vmatpush1.msra.mxu0 %v162
    %195 = vmatprep.subr.mxu0 0.0
    %196 = vmatpush1.msra.mxu0 %v163
    %197 = vmatprep.subr.mxu0 0.0
    %198 = vmatpush1.msra.mxu0 %v164
    %199 = vmatprep.subr.mxu0 0.0
    %200 = vmatpush1.msra.mxu0 %v165
    %201 = vmatprep.subr.mxu0 0.0
    %202 = vmatpush1.msra.mxu0 %v166
    %203 = vmatprep.subr.mxu0 0.0
    %204 = vmatpush1.msra.mxu0 %v167
    %205 = vmatprep.subr.mxu0 0.0
    %206 = vmatpush1.msra.mxu0 %v168
    %207 = vmatprep.subr.mxu0 0.0
    %208 = vmatpush1.msra.mxu0 %v169
    %209 = vmatprep.subr.mxu0 0.0
    %210 = vmatpush1.msra.mxu0 0.0
    %211 = vmatprep.subr.mxu0 0.0
    %212 = vmatpush1.msra.mxu0 0.0
    %213 = vmatprep.subr.mxu0 0.0
    %214 = vmatpush1.msra.mxu0 0.0
    %215 = vmatprep.subr.mxu0 0.0
    %216 = vmatpush1.msra.mxu0 0.0
    %217 = vmatprep.subr.mxu0 0.0
    %218 = vmatpush1.msra.mxu0 0.0
    %219 = vmatprep.subr.mxu0 0.0
    %220 = vmatpush1.msra.mxu0 0.0
    %221 = vmatprep.subr.mxu0 0.0
    %222 = vmatpush1.msra.mxu0 0.0
    %223 = vmatprep.subr.mxu0 0.0
    %224 = vmatpush1.msra.mxu0 0.0
    %225 = vmatprep.subr.mxu0 0.0
    %226 = vmatpush1.msra.mxu0 0.0
    %227 = vmatprep.subr.mxu0 0.0
    %228 = vmatpush1.msra.mxu0 0.0
    %229 = vmatprep.subr.mxu0 0.0
    %230 = vmatpush1.msra.mxu0 0.0
    %231 = vmatprep.subr.mxu0 0.0
    %232 = vmatpush1.msra.mxu0 0.0
    %233 = vmatprep.subr.mxu0 0.0
    %234 = vmatpush1.msra.mxu0 0.0
    %235 = vmatprep.subr.mxu0 0.0
    %236 = vmatpush1.msra.mxu0 0.0
    %237 = vmatprep.subr.mxu0 0.0
    %238 = vmatpush1.msra.mxu0 0.0
    %239 = vmatprep.subr.mxu0 0.0
    %240 = vmatpush1.msra.mxu0 0.0
    %241 = vmatprep.mubr.f32.mxu0 0.0
    %242 = vmatmul.mubr.f32.gmra.mrb[0].mxu0 %v153
    %v243 = vpop.f32.mrb[0].mxu0
    %v244 = vadd.f32 %v175, %v243
    %v245 = vpop.f32.mrb[0].mxu0
    %246 = vdwg.mxu0
    %v247 = vmax.f32 %v244, 0.0
    %v248 = vld [vmem:[%s6] sm:$0xff]
    %v249 = vld [vmem:[%s6 + $0x8] sm:$0xff]
    %v250 = vld [vmem:[%s6 + $0x10] sm:$0xff]
    %v251 = vld [vmem:[%s6 + $0x18] sm:$0xff]
    %v252 = vld [vmem:[%s6 + $0x20] sm:$0xff]
    %v253 = vld [vmem:[%s6 + $0x28] sm:$0xff]
    %v254 = vld [vmem:[%s6 + $0x30] sm:$0xff]
    %v255 = vld [vmem:[%s6 + $0x38] sm:$0xff]
    %v256 = vld [vmem:[%s6 + $0x40] sm:$0xff]
    %v257 = vld [vmem:[%s6 + $0x48] sm:$0xff]
    %v258 = vld [vmem:[%s6 + $0x50] sm:$0xff]
    %v259 = vld [vmem:[%s6 + $0x58] sm:$0xff]
    %v260 = vld [vmem:[%s6 + $0x60] sm:$0xff]
    %v261 = vld [vmem:[%s6 + $0x68] sm:$0xff]
    %v262 = vld [vmem:[%s6 + $0x70] sm:$0xff]
    %v263 = vld [vmem:[%s6 + $0x78] sm:$0xff]
    %v264 = vld [vmem:[#allocation2] sm:$0x1]
    %v266 = vlaneseq
    %v267 = vshrl.u32 %v266, 7
    %v268 = vsub.s32 0, %v267
    %v269 = vrot.slane %v264, %v268
    %271 = vmatprep.subr.mxu0 0.0
    %272 = vmatpush1.msra.mxu0 %v248
    %273 = vmatprep.subr.mxu0 0.0
    %274 = vmatpush1.msra.mxu0 %v249
    %275 = vmatprep.subr.mxu0 0.0
    %276 = vmatpush1.msra.mxu0 %v250
    %277 = vmatprep.subr.mxu0 0.0
    %278 = vmatpush1.msra.mxu0 %v251
    %279 = vmatprep.subr.mxu0 0.0
    %280 = vmatpush1.msra.mxu0 %v252
    %281 = vmatprep.subr.mxu0 0.0
    %282 = vmatpush1.msra.mxu0 %v253
    %283 = vmatprep.subr.mxu0 0.0
    %284 = vmatpush1.msra.mxu0 %v254
    %285 = vmatprep.subr.mxu0 0.0
    %286 = vmatpush1.msra.mxu0 %v255
    %287 = vmatprep.subr.mxu0 0.0
    %288 = vmatpush1.msra.mxu0 %v256
    %289 = vmatprep.subr.mxu0 0.0
    %290 = vmatpush1.msra.mxu0 %v257
    %291 = vmatprep.subr.mxu0 0.0
    %292 = vmatpush1.msra.mxu0 %v258
    %293 = vmatprep.subr.mxu0 0.0
    %294 = vmatpush1.msra.mxu0 %v259
    %295 = vmatprep.subr.mxu0 0.0
    %296 = vmatpush1.msra.mxu0 %v260
    %297 = vmatprep.subr.mxu0 0.0
    %298 = vmatpush1.msra.mxu0 %v261
    %299 = vmatprep.subr.mxu0 0.0
    %300 = vmatpush1.msra.mxu0 %v262
    %301 = vmatprep.subr.mxu0 0.0
    %302 = vmatpush1.msra.mxu0 %v263
    %303 = vmatprep.subr.mxu0 0.0
    %304 = vmatpush1.msra.mxu0 0.0
    %305 = vmatprep.subr.mxu0 0.0
    %306 = vmatpush1.msra.mxu0 0.0
    %307 = vmatprep.subr.mxu0 0.0
    %308 = vmatpush1.msra.mxu0 0.0
    %309 = vmatprep.subr.mxu0 0.0
    %310 = vmatpush1.msra.mxu0 0.0
    %311 = vmatprep.subr.mxu0 0.0
    %312 = vmatpush1.msra.mxu0 0.0
    %313 = vmatprep.subr.mxu0 0.0
    %314 = vmatpush1.msra.mxu0 0.0
    %315 = vmatprep.subr.mxu0 0.0
    %316 = vmatpush1.msra.mxu0 0.0
    %317 = vmatprep.subr.mxu0 0.0
    %318 = vmatpush1.msra.mxu0 0.0
    %319 = vmatprep.subr.mxu0 0.0
    %320 = vmatpush1.msra.mxu0 0.0
    %321 = vmatprep.subr.mxu0 0.0
    %322 = vmatpush1.msra.mxu0 0.0
    %323 = vmatprep.subr.mxu0 0.0
    %324 = vmatpush1.msra.mxu0 0.0
    %325 = vmatprep.subr.mxu0 0.0
    %326 = vmatpush1.msra.mxu0 0.0
    %327 = vmatprep.subr.mxu0 0.0
    %328 = vmatpush1.msra.mxu0 0.0
    %329 = vmatprep.subr.mxu0 0.0
    %330 = vmatpush1.msra.mxu0 0.0
    %331 = vmatprep.subr.mxu0 0.0
    %332 = vmatpush1.msra.mxu0 0.0
    %333 = vmatprep.subr.mxu0 0.0
    %334 = vmatpush1.msra.mxu0 0.0
    %335 = vmatprep.mubr.f32.mxu0 0.0
    %336 = vmatmul.mubr.f32.gmra.mrb[0].mxu0 %v247
    %v337 = vpop.f32.mrb[0].mxu0
    %v338 = vadd.f32 %v269, %v337
    %v339 = vpop.f32.mrb[0].mxu0
    %340 = vdwg.mxu0
    %vm341 = vcmask 7168
    %342 = vst.msk [vmem:[%s8] sm:$0xff] %vm341, %v338
    // Predicated region
    $region42: #{tpu_custom_call.1} parent=1 // pred_check
      _
    $region43: #{tpu_custom_call.1} parent=1 // pred_check_branch
      %344 = sbr.rel (0) target = $region45
    $region44: #{tpu_custom_call.1} parent=1 // pred_region
      _
    $region45: #{tpu_custom_call.1} parent=1 // pred_fallthru
      _
    // Predicated region
    $region46: #{tpu_custom_call.1} parent=1 // pred_check
      _
    $region47: #{tpu_custom_call.1} parent=1 // pred_check_branch
      %346 = sbr.rel (0) target = $region49
    $region48: #{tpu_custom_call.1} parent=1 // pred_region
      _
    $region49: #{tpu_custom_call.1} parent=1 // pred_fallthru
      _
    %347 = vsyncpa [#allocation4], 1
    %348 = vsyncpa [#allocation6], 1

</llo_original>
